<compile_context>
chip_gen: v5e
topology: v5e:2x2
jax: 0.10.0
libtpu: 0.0.40
codegen_flags: <defaults>
</compile_context>

<pallas_src>
import functools

import jax
import jax.numpy as jnp
from jax.experimental import pallas as pl
from jax.experimental.pallas import tpu as pltpu


# dot_general dimension numbers for lhs @ rhs^T (contract last dims of both).
_TRANS_B_DIMS = (((1,), (1,)), ((), ()))


def _round_up(v, m):
    return ((v + m - 1) // m) * m


def _temperature_kernel(x_ref, w1_ref, b1_ref, w2_ref, b2_ref, o_ref,
                        *, min_temp, scale):
    """Fused fc1 -> relu -> fc2 -> sigmoid -> affine rescale.

    x_ref : (TB, D_in)  VMEM (bf16 or f32)  -- streamed batch tile
    w1_ref: (D_in, H)   VMEM (bf16)         -- resident across grid steps
    b1_ref: (1, H)      VMEM (f32)          -- resident
    w2_ref: (1, H)      VMEM (f32)          -- fc2 weight row (PyTorch (out,in))
    b2_ref: (1, 1)      VMEM (f32)          -- resident
    o_ref : (1, TB)     VMEM (f32)          -- lane-dense output row
    """
    # fc1 + ReLU: single-pass bf16 MXU matmul, f32 accumulation.
    x = x_ref[...].astype(jnp.bfloat16)
    h = jnp.dot(x, w1_ref[...], preferred_element_type=jnp.float32)
    h = jnp.maximum(h + b1_ref[...], 0.0)                       # (TB, H) f32

    # fc2 (output_size == 1), lane-dense: (1,H) x (TB,H)^T -> (1, TB).
    y = jax.lax.dot_general(
        w2_ref[...], h, _TRANS_B_DIMS,
        preferred_element_type=jnp.float32,
    ) + b2_ref[...]                                             # (1, TB)

    # sigmoid -> rescale into [min_temp, max_temp]; lane-dense store.
    t = jax.nn.sigmoid(y) * scale + min_temp
    o_ref[...] = t.astype(o_ref.dtype)


def temperature_adjuster_forward(x, w1, b1, w2_row, b2, *,
                                 min_temp=0.7, max_temp=1.5, block_b=None):
    """x: (B, input_size) [bf16 preferred, f32 accepted]. w1: (input_size, hidden)
    [bf16 preferred]. b1: (1, hidden) f32. w2_row: (1, hidden) f32 (PyTorch
    (out,in) fc2 weight). b2: (1, 1) f32. Returns (B, 1) f32."""
    B, d_in = x.shape
    hidden = w1.shape[1]
    assert w2_row.shape == (1, hidden)
    assert b1.shape == (1, hidden)
    assert b2.shape == (1, 1)

    # Batch-tile policy (see header).
    if block_b is None:
        if B <= 256:
            block_b = 128                                  # >=2 grid steps once B > 128
        else:
            block_b = _round_up(pl.cdiv(B, 4), 128)        # ~4 steps: pipelining + megacore
            if block_b >= 512:
                block_b = _round_up(block_b, 512)          # v5e MXU feed
            block_b = min(block_b, 2048)                   # VMEM-safe on v7x
    assert block_b % 128 == 0, "block_b must be a multiple of 128 (lane-dense output)"

    num_blocks = pl.cdiv(B, block_b)
    total = num_blocks * block_b
    grid = (num_blocks,)

    flops = 2 * total * d_in * hidden + 2 * total * hidden
    bytes_accessed = (
        B * d_in * x.dtype.itemsize
        + w1.size * w1.dtype.itemsize
        + b1.size * 4 + w2_row.size * 4 + b2.size * 4
        + total * 4
    )

    kernel = functools.partial(
        _temperature_kernel,
        min_temp=float(min_temp),
        scale=float(max_temp) - float(min_temp),
    )

    out_row = pl.pallas_call(
        kernel,
        out_shape=jax.ShapeDtypeStruct((1, total), jnp.float32),
        grid=grid,
        in_specs=[
            pl.BlockSpec((block_b, d_in), lambda i: (i, 0)),   # x tile (pipelined)
            pl.BlockSpec((d_in, hidden), lambda i: (0, 0)),    # W1 (resident)
            pl.BlockSpec((1, hidden), lambda i: (0, 0)),       # b1 (resident)
            pl.BlockSpec((1, hidden), lambda i: (0, 0)),       # W2 row (resident)
            pl.BlockSpec((1, 1), lambda i: (0, 0)),            # b2 (resident)
        ],
        out_specs=pl.BlockSpec((1, block_b), lambda i: (0, i)),  # lane-dense row
        compiler_params=pltpu.CompilerParams(
            dimension_semantics=("parallel",),
        ),
        cost_estimate=pl.CostEstimate(
            flops=flops,
            transcendentals=total,
            bytes_accessed=bytes_accessed,
        ),
    )(x, w1, b1, w2_row, b2)

    # Drop padded tail rows (ragged last block) and restore (B, 1) layout.
    return out_row[0, :B].reshape(B, 1)


def init_params(key, input_size, hidden_size, output_size):
    """Deterministic init mimicking nn.Linear's uniform(-1/sqrt(fan_in), 1/sqrt(fan_in))."""
    k1, k2, k3, k4 = jax.random.split(key, 4)
    bound1 = 1.0 / jnp.sqrt(input_size)
    bound2 = 1.0 / jnp.sqrt(hidden_size)
    # fc1 stored as (in, out) so the kernel does x @ W1 (no in-kernel transpose).
    w1 = jax.random.uniform(k1, (input_size, hidden_size), jnp.float32, -bound1, bound1)
    b1 = jax.random.uniform(k2, (1, hidden_size), jnp.float32, -bound1, bound1)
    # fc2 stored as (out, in) == (1, hidden): used as a row vector in the kernel.
    w2_row = jax.random.uniform(k3, (output_size, hidden_size), jnp.float32, -bound2, bound2)
    b2 = jax.random.uniform(k4, (output_size, 1), jnp.float32, -bound2, bound2)
    return w1, b1, w2_row, b2


if __name__ == "__main__":
    INPUT_SIZE = 512     # module defaults
    HIDDEN_SIZE = 256
    OUTPUT_SIZE = 1
    MIN_TEMP = 0.7
    MAX_TEMP = 1.5
    BATCH = 256          # -> block_b=128, grid=(2,): exercises pipelining / both v7x TCs

    key = jax.random.PRNGKey(0)
    kx, kp = jax.random.split(key)
    # x streamed in bf16 (halves the dominant HBM term on all generations).
    x = jax.random.normal(kx, (BATCH, INPUT_SIZE), dtype=jnp.float32).astype(jnp.bfloat16)
    w1, b1, w2_row, b2 = init_params(kp, INPUT_SIZE, HIDDEN_SIZE, OUTPUT_SIZE)
    w1_bf16 = w1.astype(jnp.bfloat16)   # W1 streamed in bf16; f32 MXU accumulation in-kernel

    out = temperature_adjuster_forward(
        x, w1_bf16, b1, w2_row, b2, min_temp=MIN_TEMP, max_temp=MAX_TEMP,
    )
    out = jax.block_until_ready(out)

    # Pure-JAX reference on the same bf16 inputs (bf16 matmul, f32 accumulation).
    ref_h = jnp.maximum(
        jnp.dot(x, w1_bf16, preferred_element_type=jnp.float32) + b1, 0.0)
    ref_y = jnp.sum(ref_h * w2_row, axis=-1, keepdims=True) + b2
    ref = jax.nn.sigmoid(ref_y) * (MAX_TEMP - MIN_TEMP) + MIN_TEMP

    assert out.shape == (BATCH, OUTPUT_SIZE)
    assert jnp.allclose(out, ref, atol=1e-3, rtol=1e-3), "mismatch vs reference"
    # Temperature must lie in [min_temp, max_temp].
    assert bool(jnp.all((out >= MIN_TEMP) & (out <= MAX_TEMP)))

    # TODO(synk): adjust_logits_with_temperature / adjust_temperature are host-side
    # Python helpers (scalar control flow), not part of the nn.Module forward.

    print("KERNEL_OK")
</pallas_src>

<mosaic_0001>
module attributes {stable_mosaic.version = 11 : i64} {
  func.func @_temperature_kernel(%arg0: i32, %arg1: memref<128x512xbf16, #tpu.memory_space<vmem>>, %arg2: memref<512x256xbf16, #tpu.memory_space<vmem>>, %arg3: memref<1x256xf32, #tpu.memory_space<vmem>>, %arg4: memref<1x256xf32, #tpu.memory_space<vmem>>, %arg5: memref<1x1xf32, #tpu.memory_space<vmem>>, %arg6: memref<1x128xf32, #tpu.memory_space<vmem>>) attributes {dimension_semantics = [#tpu.dimension_semantics<parallel>], iteration_bounds = array<i64: 2>, scalar_prefetch = 0 : i64, scratch_operands = 0 : i64, tpu.core_type = #tpu.core_type<tc>, window_params = [{transform_indices = @transform_0, window_bounds = array<i64: 128, 512>}, {pipeline_mode = #tpu.pipeline_mode<synchronous>, transform_indices = @transform_1, window_bounds = array<i64: 512, 256>}, {pipeline_mode = #tpu.pipeline_mode<synchronous>, transform_indices = @transform_2, window_bounds = array<i64: 1, 256>}, {pipeline_mode = #tpu.pipeline_mode<synchronous>, transform_indices = @transform_3, window_bounds = array<i64: 1, 256>}, {pipeline_mode = #tpu.pipeline_mode<synchronous>, transform_indices = @transform_4, window_bounds = array<i64: 1, 1>}, {transform_indices = @transform_5, window_bounds = array<i64: 1, 128>}]} {
    %c0 = arith.constant 0 : index
    %c0_0 = arith.constant 0 : index
    %0 = vector.load %arg1[%c0, %c0_0] : memref<128x512xbf16, #tpu.memory_space<vmem>>, vector<128x512xbf16>
    %c0_1 = arith.constant 0 : index
    %c0_2 = arith.constant 0 : index
    %1 = vector.load %arg2[%c0_1, %c0_2] : memref<512x256xbf16, #tpu.memory_space<vmem>>, vector<512x256xbf16>
    %cst = arith.constant dense<0.000000e+00> : vector<128x256xf32>
    %2 = tpu.matmul %0, %1, %cst {dimension_numbers = #tpu.dot_dimension_numbers<[1], [0], [0], [1], [0, 0, 1, 1], [], []>} : vector<128x512xbf16>, vector<512x256xbf16>, vector<128x256xf32> -> vector<128x256xf32>
    %c0_3 = arith.constant 0 : index
    %c0_4 = arith.constant 0 : index
    %3 = vector.load %arg3[%c0_3, %c0_4] : memref<1x256xf32, #tpu.memory_space<vmem>>, vector<1x256xf32>
    %4 = vector.broadcast %3 : vector<1x256xf32> to vector<128x256xf32>
    %5 = arith.addf %2, %4 : vector<128x256xf32>
    %cst_5 = arith.constant 0.000000e+00 : f32
    %6 = vector.broadcast %cst_5 : f32 to vector<128x256xf32>
    %7 = arith.maximumf %5, %6 : vector<128x256xf32>
    %c0_6 = arith.constant 0 : index
    %c0_7 = arith.constant 0 : index
    %8 = vector.load %arg4[%c0_6, %c0_7] : memref<1x256xf32, #tpu.memory_space<vmem>>, vector<1x256xf32>
    %cst_8 = arith.constant dense<0.000000e+00> : vector<1x128xf32>
    %9 = tpu.matmul %8, %7, %cst_8 {dimension_numbers = #tpu.dot_dimension_numbers<[1], [1], [0], [0], [0, 0, 1, 0], [], []>} : vector<1x256xf32>, vector<128x256xf32>, vector<1x128xf32> -> vector<1x128xf32>
    %c0_9 = arith.constant 0 : index
    %c0_10 = arith.constant 0 : index
    %10 = vector.load %arg5[%c0_9, %c0_10] : memref<1x1xf32, #tpu.memory_space<vmem>>, vector<1x1xf32>
    %11 = vector.broadcast %10 : vector<1x1xf32> to vector<1x128xf32>
    %12 = arith.addf %9, %11 : vector<1x128xf32>
    %13 = arith.negf %12 : vector<1x128xf32>
    %14 = math.exp %13 : vector<1x128xf32>
    %cst_11 = arith.constant 1.000000e+00 : f32
    %15 = vector.broadcast %cst_11 : f32 to vector<1x128xf32>
    %16 = arith.addf %15, %14 : vector<1x128xf32>
    %17 = arith.divf %15, %16 : vector<1x128xf32>
    %cst_12 = arith.constant 8.000000e-01 : f32
    %18 = vector.broadcast %cst_12 : f32 to vector<1x128xf32>
    %19 = arith.mulf %17, %18 : vector<1x128xf32>
    %cst_13 = arith.constant 0.699999988 : f32
    %20 = vector.broadcast %cst_13 : f32 to vector<1x128xf32>
    %21 = arith.addf %19, %20 : vector<1x128xf32>
    %c0_14 = arith.constant 0 : index
    %c0_15 = arith.constant 0 : index
    %22 = vector.load %arg6[%c0_14, %c0_15] : memref<1x128xf32, #tpu.memory_space<vmem>>, vector<1x128xf32>
    tpu.vector_store %arg6[%c0_14, %c0_15], %21 {strides = array<i32>} : memref<1x128xf32, #tpu.memory_space<vmem>>, vector<1x128xf32>,
    return
  }
  func.func @transform_0(%arg0: i32) -> (i32, i32) {
    %c0_i32 = arith.constant 0 : i32
    %c0_i32_0 = arith.constant 0 : i32
    return %arg0, %c0_i32 : i32, i32
  }
  func.func @transform_1(%arg0: i32) -> (i32, i32) {
    %c0_i32 = arith.constant 0 : i32
    %c0_i32_0 = arith.constant 0 : i32
    %c0_i32_1 = arith.constant 0 : i32
    return %c0_i32, %c0_i32_0 : i32, i32
  }
  func.func @transform_2(%arg0: i32) -> (i32, i32) {
    %c0_i32 = arith.constant 0 : i32
    %c0_i32_0 = arith.constant 0 : i32
    %c0_i32_1 = arith.constant 0 : i32
    return %c0_i32, %c0_i32_0 : i32, i32
  }
  func.func @transform_3(%arg0: i32) -> (i32, i32) {
    %c0_i32 = arith.constant 0 : i32
    %c0_i32_0 = arith.constant 0 : i32
    %c0_i32_1 = arith.constant 0 : i32
    return %c0_i32, %c0_i32_0 : i32, i32
  }
  func.func @transform_4(%arg0: i32) -> (i32, i32) {
    %c0_i32 = arith.constant 0 : i32
    %c0_i32_0 = arith.constant 0 : i32
    %c0_i32_1 = arith.constant 0 : i32
    return %c0_i32, %c0_i32_0 : i32, i32
  }
  func.func @transform_5(%arg0: i32) -> (i32, i32) {
    %c0_i32 = arith.constant 0 : i32
    %c0_i32_0 = arith.constant 0 : i32
    return %c0_i32, %arg0 : i32, i32
  }
}

</mosaic_0001>

<llo_original>
// kernel: tpu_custom_call.1
$region0: #{tpu_custom_call.1}
  #allocation0 [shape = 'u32[]', space=smem, size = 0x4, offset = 0x4, fixed_abs, tag = 'smem constant byte address 0x4 - core index']
  #allocation1 [shape = 'u32[72,128]{1,0:T(1,128)}', space=vmem, size = 0x9000, scoped, tag = 'internal scratch']
  #allocation2 [shape = 'f32[1,1]{1,0:T(1,128)S(1)}', space=vmem, size = 0x200, scoped, tag = 'scoped memory for tpu_custom_call.1']
  %s0 = inlined_call_operand.hbm [shape: bf16[256,512], index: 0, kind: input, shape index: {}]
  %s1 = inlined_call_operand.hbm [shape: bf16[512,256], index: 1, kind: input, shape index: {}]
  %s2 = inlined_call_operand.vmem [shape: f32[1,256], index: 2, kind: input, shape index: {}]
  %s3 = inlined_call_operand.vmem [shape: f32[1,256], index: 3, kind: input, shape index: {}]
  %s4 = inlined_call_operand.<no memory space> [shape: f32[1,1], index: 4, kind: input, shape index: {}]
  %s5 = inlined_call_operand.hbm [shape: f32[1,256], index: 5, kind: output, shape index: {}]
  %s6 = sld [smem:[#allocation0]]
  $region61: #{tpu_custom_call.1} parent=0
    _
  %s8 = ssub.s32 1, %s6
  %s9 = scalar_select 0, %s8, %s6
  %v10 = vstv %s4
  %11 = vst [vmem:[#allocation2] sm:$0x1] %v10
  $region1: #{tpu_custom_call.1} parent=0
    #allocation3 [shape = 'u8[262144]{0}', space=vmem, size = 0x40000, scoped, tag = 'input window, operand 0']
    #allocation4 [shape = 's32[2]{0}', space=sflag, size = 0x8, scoped, tag = 'scoped memory for tpu_custom_call.1']
    #allocation5 [shape = 's32[2]{0}', space=sflag, size = 0x8, scoped, tag = 'scoped memory for tpu_custom_call.1']
    #allocation6 [shape = 'u8[262144]{0}', space=vmem, size = 0x40000, scoped, tag = 'input window, operand 1, single buffered']
    #allocation7 [shape = 's32[1]{0}', space=sflag, size = 0x4, scoped, tag = 'scoped memory for tpu_custom_call.1']
    #allocation8 [shape = 'u8[1024]{0}', space=vmem, size = 0x400, scoped, tag = 'output window, operand 0']
    %12 = vsyncpa [#allocation4], 0
    %s13 = scalar_lea.sflag [#allocation4], 1
    %14 = vsyncpa %s13, 0
    %15 = vsyncpa [#allocation7], 0
    %16 = vsyncpa [#allocation5], 0
    %s17 = scalar_lea.sflag [#allocation5], 1
    %18 = vsyncpa %s17, 0
    loop: start=0, step=1, limit=4
    $region2: #{tpu_custom_call.1} parent=1 // loop_pre_header
      _
    $region3: #{tpu_custom_call.1} parent=1 // loop_header
      %s20 = sphi 0, %s24
      %p21 = scmp.ge.s32.totalorder %s20, 4
      %s30 = sphi 0, %s32
      %s33 = sphi 0, %s30
      %s34 = sphi 0, %s33
      %s50 = sphi 0, %s34
      %s54 = sphi 0, %s54
      %s56 = sphi 0, %s54
      %s57 = sphi 0, %s56
      %s71 = sphi 0, %s57
      %s75 = sphi 0, %s75
      %s77 = sphi 0, %s75
      %s78 = sphi 0, %s77
      %s92 = sphi 0, %s78
      %s96 = sphi 0, %s96
      %s98 = sphi 0, %s96
      %s99 = sphi 0, %s98
      %s113 = sphi 0, %s99
      %s117 = sphi 0, %s117
      %s119 = sphi 0, %s117
      %s120 = sphi 0, %s119
      %s134 = sphi 0, %s120
      %s140 = sphi 0, %s142
      %s143 = sphi 0, %s140
      %s144 = sphi 0, %s143
      %s160 = sphi 0, %s144
    $region4: #{tpu_custom_call.1} parent=1 // loop_header_branch
      %23 = sbr.rel (%p21) target = $region8
    $region5: #{tpu_custom_call.1} parent=1 // loop_body
      %s25 = ssub.s32 %s20, 1
      %s26 = ssub.s32 %s20, 2
      %s27 = sadd.s32 %s20, 1
      %s28 = ssub.s32 %s20, %s27
      %p29 = scmp.eq.s32.totalorder %s28, 0
      %s31 = sadd.s32 %s30, 1
      %s32 = scalar_select %p29, %s30, %s31
      %p35 = pneg %p29
      %p36 = scmp.eq.s32.totalorder %s20, 1
      %p37 = por %p35, %p36
      %p38 = scmp.ne.s32.totalorder %s30, %s33
      %p39 = scmp.eq.s32.totalorder %s20, 0
      %p40 = por %p38, %p39
      %p41 = scmp.ne.s32.totalorder %s30, %s33
      %p42 = scmp.eq.s32.totalorder %s25, 1
      %p43 = por %p41, %p42
      %p44 = scmp.ne.s32.totalorder %s33, %s34
      %p45 = scmp.eq.s32.totalorder %s25, 0
      %p46 = por %p44, %p45
      %p47 = scmp.ne.s32.totalorder %s33, %s34
      %p48 = scmp.eq.s32.totalorder %s26, 1
      %p49 = por %p47, %p48
      %p51 = scmp.ne.s32.totalorder %s34, %s50
      %p52 = scmp.eq.s32.totalorder %s26, 0
      %p53 = por %p51, %p52
      %s55 = sadd.s32 %s54, 1
      %p58 = scmp.eq.s32.totalorder %s20, 1
      %p59 = scmp.ne.s32.totalorder %s54, %s56
      %p60 = scmp.eq.s32.totalorder %s20, 0
      %p61 = por %p59, %p60
      %p62 = scmp.ne.s32.totalorder %s54, %s56
      %p63 = scmp.eq.s32.totalorder %s25, 1
      %p64 = por %p62, %p63
      %p65 = scmp.ne.s32.totalorder %s56, %s57
      %p66 = scmp.eq.s32.totalorder %s25, 0
      %p67 = por %p65, %p66
      %p68 = scmp.ne.s32.totalorder %s56, %s57
      %p69 = scmp.eq.s32.totalorder %s26, 1
      %p70 = por %p68, %p69
      %p72 = scmp.ne.s32.totalorder %s57, %s71
      %p73 = scmp.eq.s32.totalorder %s26, 0
      %p74 = por %p72, %p73
      %s76 = sadd.s32 %s75, 1
      %p79 = scmp.eq.s32.totalorder %s20, 1
      %p80 = scmp.ne.s32.totalorder %s75, %s77
      %p81 = scmp.eq.s32.totalorder %s20, 0
      %p82 = por %p80, %p81
      %p83 = scmp.ne.s32.totalorder %s75, %s77
      %p84 = scmp.eq.s32.totalorder %s25, 1
      %p85 = por %p83, %p84
      %p86 = scmp.ne.s32.totalorder %s77, %s78
      %p87 = scmp.eq.s32.totalorder %s25, 0
      %p88 = por %p86, %p87
      %p89 = scmp.ne.s32.totalorder %s77, %s78
      %p90 = scmp.eq.s32.totalorder %s26, 1
      %p91 = por %p89, %p90
      %p93 = scmp.ne.s32.totalorder %s78, %s92
      %p94 = scmp.eq.s32.totalorder %s26, 0
      %p95 = por %p93, %p94
      %s97 = sadd.s32 %s96, 1
      %p100 = scmp.eq.s32.totalorder %s20, 1
      %p101 = scmp.ne.s32.totalorder %s96, %s98
      %p102 = scmp.eq.s32.totalorder %s20, 0
      %p103 = por %p101, %p102
      %p104 = scmp.ne.s32.totalorder %s96, %s98
      %p105 = scmp.eq.s32.totalorder %s25, 1
      %p106 = por %p104, %p105
      %p107 = scmp.ne.s32.totalorder %s98, %s99
      %p108 = scmp.eq.s32.totalorder %s25, 0
      %p109 = por %p107, %p108
      %p110 = scmp.ne.s32.totalorder %s98, %s99
      %p111 = scmp.eq.s32.totalorder %s26, 1
      %p112 = por %p110, %p111
      %p114 = scmp.ne.s32.totalorder %s99, %s113
      %p115 = scmp.eq.s32.totalorder %s26, 0
      %p116 = por %p114, %p115
      %s118 = sadd.s32 %s117, 1
      %p121 = scmp.eq.s32.totalorder %s20, 1
      %p122 = scmp.ne.s32.totalorder %s117, %s119
      %p123 = scmp.eq.s32.totalorder %s20, 0
      %p124 = por %p122, %p123
      %p125 = scmp.ne.s32.totalorder %s117, %s119
      %p126 = scmp.eq.s32.totalorder %s25, 1
      %p127 = por %p125, %p126
      %p128 = scmp.ne.s32.totalorder %s119, %s120
      %p129 = scmp.eq.s32.totalorder %s25, 0
      %p130 = por %p128, %p129
      %p131 = scmp.ne.s32.totalorder %s119, %s120
      %p132 = scmp.eq.s32.totalorder %s26, 1
      %p133 = por %p131, %p132
      %p135 = scmp.ne.s32.totalorder %s120, %s134
      %p136 = scmp.eq.s32.totalorder %s26, 0
      %p137 = por %p135, %p136
      %s138 = ssub.s32 %s20, %s27
      %p139 = scmp.eq.s32.totalorder %s138, 0
      %s141 = sadd.s32 %s140, 1
      %s142 = scalar_select %p139, %s140, %s141
      %p145 = pneg %p139
      %p146 = scmp.eq.s32.totalorder %s20, 1
      %p147 = por %p145, %p146
      %p148 = scmp.ne.s32.totalorder %s140, %s143
      %p149 = scmp.eq.s32.totalorder %s20, 0
      %p150 = por %p148, %p149
      %p151 = scmp.ne.s32.totalorder %s140, %s143
      %p152 = scmp.eq.s32.totalorder %s25, 1
      %p153 = por %p151, %p152
      %p154 = scmp.ne.s32.totalorder %s143, %s144
      %p155 = scmp.eq.s32.totalorder %s25, 0
      %p156 = por %p154, %p155
      %p157 = scmp.ne.s32.totalorder %s143, %s144
      %p158 = scmp.eq.s32.totalorder %s26, 1
      %p159 = por %p157, %p158
      %p161 = scmp.ne.s32.totalorder %s144, %s160
      %p162 = scmp.eq.s32.totalorder %s26, 0
      %p163 = por %p161, %p162
      %p164 = scmp.le.s32.totalorder 1, %s20
      %p165 = scmp.lt.s32.totalorder %s20, 3
      %p166 = pnand %p164, %p165
      %p167 = pneg %p166
      // Predicated region
      $region9: #{tpu_custom_call.1} parent=5 // pred_check
        _
      $region10: #{tpu_custom_call.1} parent=5 // pred_check_branch
        %169 = sbr.rel (%p166) target = $region12
      $region11: #{tpu_custom_call.1} parent=5 // pred_region
        %s170 = ssub.s32 %s20, 1
        // Predicated region
        $region13: #{tpu_custom_call.1} parent=11 // pred_check
          %p171 = pneg %p67
        $region14: #{tpu_custom_call.1} parent=11 // pred_check_branch
          %173 = sbr.rel (%p171) target = $region16
        $region15: #{tpu_custom_call.1} parent=11 // pred_region
          %175 = vsyncadd [#allocation7], 0
          %s176 = sshll.u32 %s1, 4
          %s177 = int_to_ptr.hbm [resolvable:$true] %s176
          %s178 = sshll.u32 [#allocation6], 4
          %s179 = int_to_ptr.vmem [resolvable:$true] %s178
          %184 = dma.hbm_to_vmem [thread:$0]  %s177, 8192, %s179, [#allocation7], 128, 128, 8
        $region16: #{tpu_custom_call.1} parent=11 // pred_fallthru
          _
        // Predicated region
        $region17: #{tpu_custom_call.1} parent=11 // pred_check
          %p185 = pneg %p88
        $region18: #{tpu_custom_call.1} parent=11 // pred_check_branch
          %187 = sbr.rel (%p185) target = $region20
        $region19: #{tpu_custom_call.1} parent=11 // pred_region
          _
        $region20: #{tpu_custom_call.1} parent=11 // pred_fallthru
          _
        // Predicated region
        $region21: #{tpu_custom_call.1} parent=11 // pred_check
          %p188 = pneg %p109
        $region22: #{tpu_custom_call.1} parent=11 // pred_check_branch
          %190 = sbr.rel (%p188) target = $region24
        $region23: #{tpu_custom_call.1} parent=11 // pred_region
          _
        $region24: #{tpu_custom_call.1} parent=11 // pred_fallthru
          _
        // Predicated region
        $region25: #{tpu_custom_call.1} parent=11 // pred_check
          %p191 = pneg %p130
        $region26: #{tpu_custom_call.1} parent=11 // pred_check_branch
          %193 = sbr.rel (%p191) target = $region28
        $region27: #{tpu_custom_call.1} parent=11 // pred_region
          _
        $region28: #{tpu_custom_call.1} parent=11 // pred_fallthru
          _
      $region12: #{tpu_custom_call.1} parent=5 // pred_fallthru
        _
      %p194 = scmp.lt.s32.totalorder %s20, 2
      // Predicated region
      $region29: #{tpu_custom_call.1} parent=5 // pred_check
        %p195 = pneg %p194
      $region30: #{tpu_custom_call.1} parent=5 // pred_check_branch
        %197 = sbr.rel (%p195) target = $region32
      $region31: #{tpu_custom_call.1} parent=5 // pred_region
        // Predicated region
        $region33: #{tpu_custom_call.1} parent=31 // pred_check
          %p198 = pneg %p40
        $region34: #{tpu_custom_call.1} parent=31 // pred_check_branch
          %200 = sbr.rel (%p198) target = $region36
        $region35: #{tpu_custom_call.1} parent=31 // pred_region
          %s201 = sand.u32 %s30, 1
          %s202 = scalar_lea.sflag [#allocation4], %s201
          %s203 = sand.u32 %s30, 1
          %s204 = smul.addr %s203, 256
          %s205 = scalar_lea.vmem [#allocation3], %s204
          %s206 = smul.u32 16, %s20
          %208 = vsyncadd %s202, 0
          %s209 = smul.addr %s206, 4
          %s210 = smul.addr %s209, 4
          %s211 = scalar_lea.hbm %s0, %s210
          %s212 = sshll.u32 %s211, 4
          %s213 = int_to_ptr.hbm [resolvable:$true] %s212
          %s214 = sshll.u32 %s205, 4
          %s215 = int_to_ptr.vmem [resolvable:$true] %s214
          %220 = dma.hbm_to_vmem [thread:$0]  %s213, 4096, %s215, %s202, 256, 256, 16
        $region36: #{tpu_custom_call.1} parent=31 // pred_fallthru
          _
      $region32: #{tpu_custom_call.1} parent=5 // pred_fallthru
        _
      %p221 = scmp.le.s32.totalorder 1, %s20
      %p222 = scmp.lt.s32.totalorder %s20, 3
      %p223 = pnand %p221, %p222
      %p224 = pneg %p223
      // Predicated region
      $region37: #{tpu_custom_call.1} parent=5 // pred_check
        _
      $region38: #{tpu_custom_call.1} parent=5 // pred_check_branch
        %226 = sbr.rel (%p223) target = $region40
      $region39: #{tpu_custom_call.1} parent=5 // pred_region
        %s227 = ssub.s32 %s20, 1
        %s228 = sand.u32 %s33, 1
        %s229 = scalar_lea.sflag [#allocation4], %s228
        %s230 = sand.u32 %s33, 1
        %s231 = smul.addr %s230, 256
        %s232 = scalar_lea.vmem [#allocation3], %s231
        // Predicated region
        $region41: #{tpu_custom_call.1} parent=39 // pred_check
          %p233 = pneg %p46
        $region42: #{tpu_custom_call.1} parent=39 // pred_check_branch
          %235 = sbr.rel (%p233) target = $region44
        $region43: #{tpu_custom_call.1} parent=39 // pred_region
          %237 = dma.done %s229, 4096
        $region44: #{tpu_custom_call.1} parent=39 // pred_fallthru
          _
        // Predicated region
        $region45: #{tpu_custom_call.1} parent=39 // pred_check
          %p238 = pneg %p67
        $region46: #{tpu_custom_call.1} parent=39 // pred_check_branch
          %240 = sbr.rel (%p238) target = $region48
        $region47: #{tpu_custom_call.1} parent=39 // pred_region
          %242 = dma.done [#allocation7], 8192
        $region48: #{tpu_custom_call.1} parent=39 // pred_fallthru
          _
        %s243 = sand.u32 %s33, 1
        %s244 = scalar_lea.sflag [#allocation4], %s243
        %s245 = sand.u32 %s33, 1
        %s246 = smul.addr %s245, 256
        %s247 = scalar_lea.vmem [#allocation3], %s246
        %p248 = pneg %p46
        %p249 = pneg %p43
        %p250 = pneg %p67
        %p251 = pneg %p64
        %p252 = pneg %p88
        %p253 = pneg %p85
        %p254 = pneg %p109
        %p255 = pneg %p106
        %p256 = pneg %p130
        %p257 = pneg %p127
        %p258 = pneg %p156
        %p259 = pneg %p153
        %s260 = sand.u32 %s143, 1
        %s261 = scalar_lea.sflag [#allocation5], %s260
        %s262 = sand.u32 %s143, 1
        %s263 = scalar_lea.vmem [#allocation8], %s262
        %s264 = smul.u32 16, %s25
        %v265 = vld [vmem:[%s232] sm:$0xff]
        %v266 = vld [vmem:[%s232 + $0x8] sm:$0xff]
        %v267 = vld [vmem:[%s232 + $0x10] sm:$0xff]
        %v268 = vld [vmem:[%s232 + $0x18] sm:$0xff]
        %v269 = vld [vmem:[%s232 + $0x20] sm:$0xff]
        %v270 = vld [vmem:[%s232 + $0x28] sm:$0xff]
        %v271 = vld [vmem:[%s232 + $0x30] sm:$0xff]
        %v272 = vld [vmem:[%s232 + $0x38] sm:$0xff]
        %v273 = vld [vmem:[%s232 + $0x40] sm:$0xff]
        %v274 = vld [vmem:[%s232 + $0x48] sm:$0xff]
        %v275 = vld [vmem:[%s232 + $0x50] sm:$0xff]
        %v276 = vld [vmem:[%s232 + $0x58] sm:$0xff]
        %v277 = vld [vmem:[%s232 + $0x60] sm:$0xff]
        %v278 = vld [vmem:[%s232 + $0x68] sm:$0xff]
        %v279 = vld [vmem:[%s232 + $0x70] sm:$0xff]
        %v280 = vld [vmem:[%s232 + $0x78] sm:$0xff]
        %v281 = vld [vmem:[%s232 + $0x80] sm:$0xff]
        %v282 = vld [vmem:[%s232 + $0x88] sm:$0xff]
        %v283 = vld [vmem:[%s232 + $0x90] sm:$0xff]
        %v284 = vld [vmem:[%s232 + $0x98] sm:$0xff]
        %v285 = vld [vmem:[%s232 + $0xa0] sm:$0xff]
        %v286 = vld [vmem:[%s232 + $0xa8] sm:$0xff]
        %v287 = vld [vmem:[%s232 + $0xb0] sm:$0xff]
        %v288 = vld [vmem:[%s232 + $0xb8] sm:$0xff]
        %v289 = vld [vmem:[%s232 + $0xc0] sm:$0xff]
        %v290 = vld [vmem:[%s232 + $0xc8] sm:$0xff]
        %v291 = vld [vmem:[%s232 + $0xd0] sm:$0xff]
        %v292 = vld [vmem:[%s232 + $0xd8] sm:$0xff]
        %v293 = vld [vmem:[%s232 + $0xe0] sm:$0xff]
        %v294 = vld [vmem:[%s232 + $0xe8] sm:$0xff]
        %v295 = vld [vmem:[%s232 + $0xf0] sm:$0xff]
        %v296 = vld [vmem:[%s232 + $0xf8] sm:$0xff]
        %v297 = vld [vmem:[#allocation6] sm:$0xff]
        %v298 = vld [vmem:[#allocation6 + $0x8] sm:$0xff]
        %v299 = vld [vmem:[#allocation6 + $0x10] sm:$0xff]
        %v300 = vld [vmem:[#allocation6 + $0x18] sm:$0xff]
        %v301 = vld [vmem:[#allocation6 + $0x20] sm:$0xff]
        %v302 = vld [vmem:[#allocation6 + $0x28] sm:$0xff]
        %v303 = vld [vmem:[#allocation6 + $0x30] sm:$0xff]
        %v304 = vld [vmem:[#allocation6 + $0x38] sm:$0xff]
        %v305 = vld [vmem:[#allocation6 + $0x40] sm:$0xff]
        %v306 = vld [vmem:[#allocation6 + $0x48] sm:$0xff]
        %v307 = vld [vmem:[#allocation6 + $0x50] sm:$0xff]
        %v308 = vld [vmem:[#allocation6 + $0x58] sm:$0xff]
        %v309 = vld [vmem:[#allocation6 + $0x60] sm:$0xff]
        %v310 = vld [vmem:[#allocation6 + $0x68] sm:$0xff]
        %v311 = vld [vmem:[#allocation6 + $0x70] sm:$0xff]
        %v312 = vld [vmem:[#allocation6 + $0x78] sm:$0xff]
        %v313 = vld [vmem:[#allocation6 + $0x80] sm:$0xff]
        %v314 = vld [vmem:[#allocation6 + $0x88] sm:$0xff]
        %v315 = vld [vmem:[#allocation6 + $0x90] sm:$0xff]
        %v316 = vld [vmem:[#allocation6 + $0x98] sm:$0xff]
        %v317 = vld [vmem:[#allocation6 + $0xa0] sm:$0xff]
        %v318 = vld [vmem:[#allocation6 + $0xa8] sm:$0xff]
        %v319 = vld [vmem:[#allocation6 + $0xb0] sm:$0xff]
        %v320 = vld [vmem:[#allocation6 + $0xb8] sm:$0xff]
        %v321 = vld [vmem:[#allocation6 + $0xc0] sm:$0xff]
        %v322 = vld [vmem:[#allocation6 + $0xc8] sm:$0xff]
        %v323 = vld [vmem:[#allocation6 + $0xd0] sm:$0xff]
        %v324 = vld [vmem:[#allocation6 + $0xd8] sm:$0xff]
        %v325 = vld [vmem:[#allocation6 + $0xe0] sm:$0xff]
        %v326 = vld [vmem:[#allocation6 + $0xe8] sm:$0xff]
        %v327 = vld [vmem:[#allocation6 + $0xf0] sm:$0xff]
        %v328 = vld [vmem:[#allocation6 + $0xf8] sm:$0xff]
        %v329 = vld [vmem:[#allocation6 + $0x100] sm:$0xff]
        %v330 = vld [vmem:[#allocation6 + $0x108] sm:$0xff]
        %v331 = vld [vmem:[#allocation6 + $0x110] sm:$0xff]
        %v332 = vld [vmem:[#allocation6 + $0x118] sm:$0xff]
        %v333 = vld [vmem:[#allocation6 + $0x120] sm:$0xff]
        %v334 = vld [vmem:[#allocation6 + $0x128] sm:$0xff]
        %v335 = vld [vmem:[#allocation6 + $0x130] sm:$0xff]
        %v336 = vld [vmem:[#allocation6 + $0x138] sm:$0xff]
        %v337 = vld [vmem:[#allocation6 + $0x140] sm:$0xff]
        %v338 = vld [vmem:[#allocation6 + $0x148] sm:$0xff]
        %v339 = vld [vmem:[#allocation6 + $0x150] sm:$0xff]
        %v340 = vld [vmem:[#allocation6 + $0x158] sm:$0xff]
        %v341 = vld [vmem:[#allocation6 + $0x160] sm:$0xff]
        %v342 = vld [vmem:[#allocation6 + $0x168] sm:$0xff]
        %v343 = vld [vmem:[#allocation6 + $0x170] sm:$0xff]
        %v344 = vld [vmem:[#allocation6 + $0x178] sm:$0xff]
        %v345 = vld [vmem:[#allocation6 + $0x180] sm:$0xff]
        %v346 = vld [vmem:[#allocation6 + $0x188] sm:$0xff]
        %v347 = vld [vmem:[#allocation6 + $0x190] sm:$0xff]
        %v348 = vld [vmem:[#allocation6 + $0x198] sm:$0xff]
        %v349 = vld [vmem:[#allocation6 + $0x1a0] sm:$0xff]
        %v350 = vld [vmem:[#allocation6 + $0x1a8] sm:$0xff]
        %v351 = vld [vmem:[#allocation6 + $0x1b0] sm:$0xff]
        %v352 = vld [vmem:[#allocation6 + $0x1b8] sm:$0xff]
        %v353 = vld [vmem:[#allocation6 + $0x1c0] sm:$0xff]
        %v354 = vld [vmem:[#allocation6 + $0x1c8] sm:$0xff]
        %v355 = vld [vmem:[#allocation6 + $0x1d0] sm:$0xff]
        %v356 = vld [vmem:[#allocation6 + $0x1d8] sm:$0xff]
        %v357 = vld [vmem:[#allocation6 + $0x1e0] sm:$0xff]
        %v358 = vld [vmem:[#allocation6 + $0x1e8] sm:$0xff]
        %v359 = vld [vmem:[#allocation6 + $0x1f0] sm:$0xff]
        %v360 = vld [vmem:[#allocation6 + $0x1f8] sm:$0xff]
        %v361 = vld [vmem:[%s2] sm:$0x3]
        %v363 = vperm.slane %v361, 0
        %v364 = vperm.slane %v361, 1
        %v399 = vunpack.c.l.b16 %v265
        %v400 = vunpack.c.h.b16 %v265
        %v401 = vunpack.c.l.b16 %v266
        %v402 = vunpack.c.h.b16 %v266
        %v403 = vunpack.c.l.b16 %v267
        %v404 = vunpack.c.h.b16 %v267
        %v405 = vunpack.c.l.b16 %v268
        %v406 = vunpack.c.h.b16 %v268
        %v407 = vunpack.c.l.b16 %v269
        %v408 = vunpack.c.h.b16 %v269
        %v409 = vunpack.c.l.b16 %v270
        %v410 = vunpack.c.h.b16 %v270
        %v411 = vunpack.c.l.b16 %v271
        %v412 = vunpack.c.h.b16 %v271
        %v413 = vunpack.c.l.b16 %v272
        %v414 = vunpack.c.h.b16 %v272
        %v415 = vunpack.c.l.b16 %v273
        %v416 = vunpack.c.h.b16 %v273
        %v417 = vunpack.c.l.b16 %v274
        %v418 = vunpack.c.h.b16 %v274
        %v419 = vunpack.c.l.b16 %v275
        %v420 = vunpack.c.h.b16 %v275
        %v421 = vunpack.c.l.b16 %v276
        %v422 = vunpack.c.h.b16 %v276
        %v423 = vunpack.c.l.b16 %v277
        %v424 = vunpack.c.h.b16 %v277
        %v425 = vunpack.c.l.b16 %v278
        %v426 = vunpack.c.h.b16 %v278
        %v427 = vunpack.c.l.b16 %v279
        %v428 = vunpack.c.h.b16 %v279
        %v429 = vunpack.c.l.b16 %v280
        %v430 = vunpack.c.h.b16 %v280
        %v431 = vunpack.c.l.b16 %v281
        %v432 = vunpack.c.h.b16 %v281
        %v433 = vunpack.c.l.b16 %v282
        %v434 = vunpack.c.h.b16 %v282
        %v435 = vunpack.c.l.b16 %v283
        %v436 = vunpack.c.h.b16 %v283
        %v437 = vunpack.c.l.b16 %v284
        %v438 = vunpack.c.h.b16 %v284
        %v439 = vunpack.c.l.b16 %v285
        %v440 = vunpack.c.h.b16 %v285
        %v441 = vunpack.c.l.b16 %v286
        %v442 = vunpack.c.h.b16 %v286
        %v443 = vunpack.c.l.b16 %v287
        %v444 = vunpack.c.h.b16 %v287
        %v445 = vunpack.c.l.b16 %v288
        %v446 = vunpack.c.h.b16 %v288
        %v447 = vunpack.c.l.b16 %v289
        %v448 = vunpack.c.h.b16 %v289
        %v449 = vunpack.c.l.b16 %v290
        %v450 = vunpack.c.h.b16 %v290
        %v451 = vunpack.c.l.b16 %v291
        %v452 = vunpack.c.h.b16 %v291
        %v453 = vunpack.c.l.b16 %v292
        %v454 = vunpack.c.h.b16 %v292
        %v455 = vunpack.c.l.b16 %v293
        %v456 = vunpack.c.h.b16 %v293
        %v457 = vunpack.c.l.b16 %v294
        %v458 = vunpack.c.h.b16 %v294
        %v459 = vunpack.c.l.b16 %v295
        %v460 = vunpack.c.h.b16 %v295
        %v461 = vunpack.c.l.b16 %v296
        %v462 = vunpack.c.h.b16 %v296
        %v463 = vpack.c.b16 %v403, %v399
        %v464 = vpack.c.b16 %v404, %v400
        %v465 = vpack.c.b16 %v405, %v401
        %v466 = vpack.c.b16 %v406, %v402
        %v467 = vpack.c.b16 %v411, %v407
        %v468 = vpack.c.b16 %v412, %v408
        %v469 = vpack.c.b16 %v413, %v409
        %v470 = vpack.c.b16 %v414, %v410
        %v471 = vpack.c.b16 %v419, %v415
        %v472 = vpack.c.b16 %v420, %v416
        %v473 = vpack.c.b16 %v421, %v417
        %v474 = vpack.c.b16 %v422, %v418
        %v475 = vpack.c.b16 %v427, %v423
        %v476 = vpack.c.b16 %v428, %v424
        %v477 = vpack.c.b16 %v429, %v425
        %v478 = vpack.c.b16 %v430, %v426
        %v479 = vpack.c.b16 %v435, %v431
        %v480 = vpack.c.b16 %v436, %v432
        %v481 = vpack.c.b16 %v437, %v433
        %v482 = vpack.c.b16 %v438, %v434
        %v483 = vpack.c.b16 %v443, %v439
        %v484 = vpack.c.b16 %v444, %v440
        %v485 = vpack.c.b16 %v445, %v441
        %v486 = vpack.c.b16 %v446, %v442
        %v487 = vpack.c.b16 %v451, %v447
        %v488 = vpack.c.b16 %v452, %v448
        %v489 = vpack.c.b16 %v453, %v449
        %v490 = vpack.c.b16 %v454, %v450
        %v491 = vpack.c.b16 %v459, %v455
        %v492 = vpack.c.b16 %v460, %v456
        %v493 = vpack.c.b16 %v461, %v457
        %v494 = vpack.c.b16 %v462, %v458
        %v591 = vunpack.c.l.b16 %v297
        %v592 = vunpack.c.h.b16 %v297
        %v593 = vunpack.c.l.b16 %v298
        %v594 = vunpack.c.h.b16 %v298
        %v595 = vunpack.c.l.b16 %v299
        %v596 = vunpack.c.h.b16 %v299
        %v597 = vunpack.c.l.b16 %v300
        %v598 = vunpack.c.h.b16 %v300
        %v599 = vunpack.c.l.b16 %v301
        %v600 = vunpack.c.h.b16 %v301
        %v601 = vunpack.c.l.b16 %v302
        %v602 = vunpack.c.h.b16 %v302
        %v603 = vunpack.c.l.b16 %v303
        %v604 = vunpack.c.h.b16 %v303
        %v605 = vunpack.c.l.b16 %v304
        %v606 = vunpack.c.h.b16 %v304
        %v607 = vunpack.c.l.b16 %v305
        %v608 = vunpack.c.h.b16 %v305
        %v609 = vunpack.c.l.b16 %v306
        %v610 = vunpack.c.h.b16 %v306
        %v611 = vunpack.c.l.b16 %v307
        %v612 = vunpack.c.h.b16 %v307
        %v613 = vunpack.c.l.b16 %v308
        %v614 = vunpack.c.h.b16 %v308
        %v615 = vunpack.c.l.b16 %v309
        %v616 = vunpack.c.h.b16 %v309
        %v617 = vunpack.c.l.b16 %v310
        %v618 = vunpack.c.h.b16 %v310
        %v619 = vunpack.c.l.b16 %v311
        %v620 = vunpack.c.h.b16 %v311
        %v621 = vunpack.c.l.b16 %v312
        %v622 = vunpack.c.h.b16 %v312
        %v623 = vunpack.c.l.b16 %v313
        %v624 = vunpack.c.h.b16 %v313
        %v625 = vunpack.c.l.b16 %v314
        %v626 = vunpack.c.h.b16 %v314
        %v627 = vunpack.c.l.b16 %v315
        %v628 = vunpack.c.h.b16 %v315
        %v629 = vunpack.c.l.b16 %v316
        %v630 = vunpack.c.h.b16 %v316
        %v631 = vunpack.c.l.b16 %v317
        %v632 = vunpack.c.h.b16 %v317
        %v633 = vunpack.c.l.b16 %v318
        %v634 = vunpack.c.h.b16 %v318
        %v635 = vunpack.c.l.b16 %v319
        %v636 = vunpack.c.h.b16 %v319
        %v637 = vunpack.c.l.b16 %v320
        %v638 = vunpack.c.h.b16 %v320
        %v639 = vunpack.c.l.b16 %v321
        %v640 = vunpack.c.h.b16 %v321
        %v641 = vunpack.c.l.b16 %v322
        %v642 = vunpack.c.h.b16 %v322
        %v643 = vunpack.c.l.b16 %v323
        %v644 = vunpack.c.h.b16 %v323
        %v645 = vunpack.c.l.b16 %v324
        %v646 = vunpack.c.h.b16 %v324
        %v647 = vunpack.c.l.b16 %v325
        %v648 = vunpack.c.h.b16 %v325
        %v649 = vunpack.c.l.b16 %v326
        %v650 = vunpack.c.h.b16 %v326
        %v651 = vunpack.c.l.b16 %v327
        %v652 = vunpack.c.h.b16 %v327
        %v653 = vunpack.c.l.b16 %v328
        %v654 = vunpack.c.h.b16 %v328
        %v655 = vunpack.c.l.b16 %v329
        %v656 = vunpack.c.h.b16 %v329
        %v657 = vunpack.c.l.b16 %v330
        %v658 = vunpack.c.h.b16 %v330
        %v659 = vunpack.c.l.b16 %v331
        %v660 = vunpack.c.h.b16 %v331
        %v661 = vunpack.c.l.b16 %v332
        %v662 = vunpack.c.h.b16 %v332
        %v663 = vunpack.c.l.b16 %v333
        %v664 = vunpack.c.h.b16 %v333
        %v665 = vunpack.c.l.b16 %v334
        %v666 = vunpack.c.h.b16 %v334
        %v667 = vunpack.c.l.b16 %v335
        %v668 = vunpack.c.h.b16 %v335
        %v669 = vunpack.c.l.b16 %v336
        %v670 = vunpack.c.h.b16 %v336
        %v671 = vunpack.c.l.b16 %v337
        %v672 = vunpack.c.h.b16 %v337
        %v673 = vunpack.c.l.b16 %v338
        %v674 = vunpack.c.h.b16 %v338
        %v675 = vunpack.c.l.b16 %v339
        %v676 = vunpack.c.h.b16 %v339
        %v677 = vunpack.c.l.b16 %v340
        %v678 = vunpack.c.h.b16 %v340
        %v679 = vunpack.c.l.b16 %v341
        %v680 = vunpack.c.h.b16 %v341
        %v681 = vunpack.c.l.b16 %v342
        %v682 = vunpack.c.h.b16 %v342
        %v683 = vunpack.c.l.b16 %v343
        %v684 = vunpack.c.h.b16 %v343
        %v685 = vunpack.c.l.b16 %v344
        %v686 = vunpack.c.h.b16 %v344
        %v687 = vunpack.c.l.b16 %v345
        %v688 = vunpack.c.h.b16 %v345
        %v689 = vunpack.c.l.b16 %v346
        %v690 = vunpack.c.h.b16 %v346
        %v691 = vunpack.c.l.b16 %v347
        %v692 = vunpack.c.h.b16 %v347
        %v693 = vunpack.c.l.b16 %v348
        %v694 = vunpack.c.h.b16 %v348
        %v695 = vunpack.c.l.b16 %v349
        %v696 = vunpack.c.h.b16 %v349
        %v697 = vunpack.c.l.b16 %v350
        %v698 = vunpack.c.h.b16 %v350
        %v699 = vunpack.c.l.b16 %v351
        %v700 = vunpack.c.h.b16 %v351
        %v701 = vunpack.c.l.b16 %v352
        %v702 = vunpack.c.h.b16 %v352
        %v703 = vunpack.c.l.b16 %v353
        %v704 = vunpack.c.h.b16 %v353
        %v705 = vunpack.c.l.b16 %v354
        %v706 = vunpack.c.h.b16 %v354
        %v707 = vunpack.c.l.b16 %v355
        %v708 = vunpack.c.h.b16 %v355
        %v709 = vunpack.c.l.b16 %v356
        %v710 = vunpack.c.h.b16 %v356
        %v711 = vunpack.c.l.b16 %v357
        %v712 = vunpack.c.h.b16 %v357
        %v713 = vunpack.c.l.b16 %v358
        %v714 = vunpack.c.h.b16 %v358
        %v715 = vunpack.c.l.b16 %v359
        %v716 = vunpack.c.h.b16 %v359
        %v717 = vunpack.c.l.b16 %v360
        %v718 = vunpack.c.h.b16 %v360
        %v719 = vpack.c.b16 %v593, %v591
        %v720 = vpack.c.b16 %v594, %v592
        %v721 = vpack.c.b16 %v597, %v595
        %v722 = vpack.c.b16 %v598, %v596
        %v723 = vpack.c.b16 %v601, %v599
        %v724 = vpack.c.b16 %v602, %v600
        %v725 = vpack.c.b16 %v605, %v603
        %v726 = vpack.c.b16 %v606, %v604
        %v727 = vpack.c.b16 %v609, %v607
        %v728 = vpack.c.b16 %v610, %v608
        %v729 = vpack.c.b16 %v613, %v611
        %v730 = vpack.c.b16 %v614, %v612
        %v731 = vpack.c.b16 %v617, %v615
        %v732 = vpack.c.b16 %v618, %v616
        %v733 = vpack.c.b16 %v621, %v619
        %v734 = vpack.c.b16 %v622, %v620
        %v735 = vpack.c.b16 %v625, %v623
        %v736 = vpack.c.b16 %v626, %v624
        %v737 = vpack.c.b16 %v629, %v627
        %v738 = vpack.c.b16 %v630, %v628
        %v739 = vpack.c.b16 %v633, %v631
        %v740 = vpack.c.b16 %v634, %v632
        %v741 = vpack.c.b16 %v637, %v635
        %v742 = vpack.c.b16 %v638, %v636
        %v743 = vpack.c.b16 %v641, %v639
        %v744 = vpack.c.b16 %v642, %v640
        %v745 = vpack.c.b16 %v645, %v643
        %v746 = vpack.c.b16 %v646, %v644
        %v747 = vpack.c.b16 %v649, %v647
        %v748 = vpack.c.b16 %v650, %v648
        %v749 = vpack.c.b16 %v653, %v651
        %v750 = vpack.c.b16 %v654, %v652
        %v751 = vpack.c.b16 %v657, %v655
        %v752 = vpack.c.b16 %v658, %v656
        %v753 = vpack.c.b16 %v661, %v659
        %v754 = vpack.c.b16 %v662, %v660
        %v755 = vpack.c.b16 %v665, %v663
        %v756 = vpack.c.b16 %v666, %v664
        %v757 = vpack.c.b16 %v669, %v667
        %v758 = vpack.c.b16 %v670, %v668
        %v759 = vpack.c.b16 %v673, %v671
        %v760 = vpack.c.b16 %v674, %v672
        %v761 = vpack.c.b16 %v677, %v675
        %v762 = vpack.c.b16 %v678, %v676
        %v763 = vpack.c.b16 %v681, %v679
        %v764 = vpack.c.b16 %v682, %v680
        %v765 = vpack.c.b16 %v685, %v683
        %v766 = vpack.c.b16 %v686, %v684
        %v767 = vpack.c.b16 %v689, %v687
        %v768 = vpack.c.b16 %v690, %v688
        %v769 = vpack.c.b16 %v693, %v691
        %v770 = vpack.c.b16 %v694, %v692
        %v771 = vpack.c.b16 %v697, %v695
        %v772 = vpack.c.b16 %v698, %v696
        %v773 = vpack.c.b16 %v701, %v699
        %v774 = vpack.c.b16 %v702, %v700
        %v775 = vpack.c.b16 %v705, %v703
        %v776 = vpack.c.b16 %v706, %v704
        %v777 = vpack.c.b16 %v709, %v707
        %v778 = vpack.c.b16 %v710, %v708
        %v779 = vpack.c.b16 %v713, %v711
        %v780 = vpack.c.b16 %v714, %v712
        %v781 = vpack.c.b16 %v717, %v715
        %v782 = vpack.c.b16 %v718, %v716
        %847 = vmatpush.bf16.msra.mxu0 %v733
        %848 = vmatpush.bf16.msra.mxu0 %v731
        %849 = vmatpush.bf16.msra.mxu0 %v729
        %850 = vmatpush.bf16.msra.mxu0 %v727
        %851 = vmatpush.bf16.msra.mxu0 %v725
        %852 = vmatpush.bf16.msra.mxu0 %v723
        %853 = vmatpush.bf16.msra.mxu0 %v721
        %854 = vmatpush.bf16.msra.mxu0 %v719
        %855 = vmatmul.bf16.gmra.mxu0 %v463
        %v856 = vpop.f32.mrf.mxu0
        %v857 = vadd.f32 %v363, %v856
        %v858 = vpop.f32.mrf.mxu0
        %v859 = vadd.f32 %v363, %v858
        %860 = vmatmul.bf16.gmra.mxu0 %v467
        %v861 = vpop.f32.mrf.mxu0
        %v862 = vadd.f32 %v363, %v861
        %v863 = vpop.f32.mrf.mxu0
        %v864 = vadd.f32 %v363, %v863
        %865 = vmatmul.bf16.gmra.mxu0 %v471
        %v866 = vpop.f32.mrf.mxu0
        %v867 = vadd.f32 %v363, %v866
        %v868 = vpop.f32.mrf.mxu0
        %v869 = vadd.f32 %v363, %v868
        %870 = vmatmul.bf16.gmra.mxu0 %v475
        %v871 = vpop.f32.mrf.mxu0
        %v872 = vadd.f32 %v363, %v871
        %v873 = vpop.f32.mrf.mxu0
        %v874 = vadd.f32 %v363, %v873
        %875 = vmatmul.bf16.gmra.mxu0 %v479
        %v876 = vpop.f32.mrf.mxu0
        %v877 = vadd.f32 %v363, %v876
        %v878 = vpop.f32.mrf.mxu0
        %v879 = vadd.f32 %v363, %v878
        %880 = vmatmul.bf16.gmra.mxu0 %v483
        %v881 = vpop.f32.mrf.mxu0
        %v882 = vadd.f32 %v363, %v881
        %v883 = vpop.f32.mrf.mxu0
        %v884 = vadd.f32 %v363, %v883
        %885 = vmatmul.bf16.gmra.mxu0 %v487
        %v886 = vpop.f32.mrf.mxu0
        %v887 = vadd.f32 %v363, %v886
        %v888 = vpop.f32.mrf.mxu0
        %v889 = vadd.f32 %v363, %v888
        %890 = vmatmul.bf16.gmra.mxu0 %v491
        %v891 = vpop.f32.mrf.mxu0
        %v892 = vadd.f32 %v363, %v891
        %v893 = vpop.f32.mrf.mxu0
        %v894 = vadd.f32 %v363, %v893
        %895 = vdwg.mxu0
        %896 = vmatpush.bf16.msra.mxu0 %v749
        %897 = vmatpush.bf16.msra.mxu0 %v747
        %898 = vmatpush.bf16.msra.mxu0 %v745
        %899 = vmatpush.bf16.msra.mxu0 %v743
        %900 = vmatpush.bf16.msra.mxu0 %v741
        %901 = vmatpush.bf16.msra.mxu0 %v739
        %902 = vmatpush.bf16.msra.mxu0 %v737
        %903 = vmatpush.bf16.msra.mxu0 %v735
        %904 = vmatmul.bf16.gmra.mxu0 %v464
        %v905 = vpop.f32.mrf.mxu0
        %v906 = vadd.f32 %v857, %v905
        %v907 = vpop.f32.mrf.mxu0
        %v908 = vadd.f32 %v859, %v907
        %909 = vmatmul.bf16.gmra.mxu0 %v468
        %v910 = vpop.f32.mrf.mxu0
        %v911 = vadd.f32 %v862, %v910
        %v912 = vpop.f32.mrf.mxu0
        %v913 = vadd.f32 %v864, %v912
        %914 = vmatmul.bf16.gmra.mxu0 %v472
        %v915 = vpop.f32.mrf.mxu0
        %v916 = vadd.f32 %v867, %v915
        %v917 = vpop.f32.mrf.mxu0
        %v918 = vadd.f32 %v869, %v917
        %919 = vmatmul.bf16.gmra.mxu0 %v476
        %v920 = vpop.f32.mrf.mxu0
        %v921 = vadd.f32 %v872, %v920
        %v922 = vpop.f32.mrf.mxu0
        %v923 = vadd.f32 %v874, %v922
        %924 = vmatmul.bf16.gmra.mxu0 %v480
        %v925 = vpop.f32.mrf.mxu0
        %v926 = vadd.f32 %v877, %v925
        %v927 = vpop.f32.mrf.mxu0
        %v928 = vadd.f32 %v879, %v927
        %929 = vmatmul.bf16.gmra.mxu0 %v484
        %v930 = vpop.f32.mrf.mxu0
        %v931 = vadd.f32 %v882, %v930
        %v932 = vpop.f32.mrf.mxu0
        %v933 = vadd.f32 %v884, %v932
        %934 = vmatmul.bf16.gmra.mxu0 %v488
        %v935 = vpop.f32.mrf.mxu0
        %v936 = vadd.f32 %v887, %v935
        %v937 = vpop.f32.mrf.mxu0
        %v938 = vadd.f32 %v889, %v937
        %939 = vmatmul.bf16.gmra.mxu0 %v492
        %v940 = vpop.f32.mrf.mxu0
        %v941 = vadd.f32 %v892, %v940
        %v942 = vpop.f32.mrf.mxu0
        %v943 = vadd.f32 %v894, %v942
        %944 = vdwg.mxu0
        %945 = vmatpush.bf16.msra.mxu0 %v765
        %946 = vmatpush.bf16.msra.mxu0 %v763
        %947 = vmatpush.bf16.msra.mxu0 %v761
        %948 = vmatpush.bf16.msra.mxu0 %v759
        %949 = vmatpush.bf16.msra.mxu0 %v757
        %950 = vmatpush.bf16.msra.mxu0 %v755
        %951 = vmatpush.bf16.msra.mxu0 %v753
        %952 = vmatpush.bf16.msra.mxu0 %v751
        %953 = vmatmul.bf16.gmra.mxu0 %v465
        %v954 = vpop.f32.mrf.mxu0
        %v955 = vadd.f32 %v906, %v954
        %v956 = vpop.f32.mrf.mxu0
        %v957 = vadd.f32 %v908, %v956
        %958 = vmatmul.bf16.gmra.mxu0 %v469
        %v959 = vpop.f32.mrf.mxu0
        %v960 = vadd.f32 %v911, %v959
        %v961 = vpop.f32.mrf.mxu0
        %v962 = vadd.f32 %v913, %v961
        %963 = vmatmul.bf16.gmra.mxu0 %v473
        %v964 = vpop.f32.mrf.mxu0
        %v965 = vadd.f32 %v916, %v964
        %v966 = vpop.f32.mrf.mxu0
        %v967 = vadd.f32 %v918, %v966
        %968 = vmatmul.bf16.gmra.mxu0 %v477
        %v969 = vpop.f32.mrf.mxu0
        %v970 = vadd.f32 %v921, %v969
        %v971 = vpop.f32.mrf.mxu0
        %v972 = vadd.f32 %v923, %v971
        %973 = vmatmul.bf16.gmra.mxu0 %v481
        %v974 = vpop.f32.mrf.mxu0
        %v975 = vadd.f32 %v926, %v974
        %v976 = vpop.f32.mrf.mxu0
        %v977 = vadd.f32 %v928, %v976
        %978 = vmatmul.bf16.gmra.mxu0 %v485
        %v979 = vpop.f32.mrf.mxu0
        %v980 = vadd.f32 %v931, %v979
        %v981 = vpop.f32.mrf.mxu0
        %v982 = vadd.f32 %v933, %v981
        %983 = vmatmul.bf16.gmra.mxu0 %v489
        %v984 = vpop.f32.mrf.mxu0
        %v985 = vadd.f32 %v936, %v984
        %v986 = vpop.f32.mrf.mxu0
        %v987 = vadd.f32 %v938, %v986
        %988 = vmatmul.bf16.gmra.mxu0 %v493
        %v989 = vpop.f32.mrf.mxu0
        %v990 = vadd.f32 %v941, %v989
        %v991 = vpop.f32.mrf.mxu0
        %v992 = vadd.f32 %v943, %v991
        %993 = vdwg.mxu0
        %994 = vmatpush.bf16.msra.mxu0 %v781
        %995 = vmatpush.bf16.msra.mxu0 %v779
        %996 = vmatpush.bf16.msra.mxu0 %v777
        %997 = vmatpush.bf16.msra.mxu0 %v775
        %998 = vmatpush.bf16.msra.mxu0 %v773
        %999 = vmatpush.bf16.msra.mxu0 %v771
        %1000 = vmatpush.bf16.msra.mxu0 %v769
        %1001 = vmatpush.bf16.msra.mxu0 %v767
        %1002 = vmatmul.bf16.gmra.mxu0 %v466
        %v1003 = vpop.f32.mrf.mxu0
        %v1004 = vadd.f32 %v955, %v1003
        %v1005 = vpop.f32.mrf.mxu0
        %v1006 = vadd.f32 %v957, %v1005
        %1007 = vmatmul.bf16.gmra.mxu0 %v470
        %v1008 = vpop.f32.mrf.mxu0
        %v1009 = vadd.f32 %v960, %v1008
        %v1010 = vpop.f32.mrf.mxu0
        %v1011 = vadd.f32 %v962, %v1010
        %1012 = vmatmul.bf16.gmra.mxu0 %v474
        %v1013 = vpop.f32.mrf.mxu0
        %v1014 = vadd.f32 %v965, %v1013
        %v1015 = vpop.f32.mrf.mxu0
        %v1016 = vadd.f32 %v967, %v1015
        %1017 = vmatmul.bf16.gmra.mxu0 %v478
        %v1018 = vpop.f32.mrf.mxu0
        %v1019 = vadd.f32 %v970, %v1018
        %v1020 = vpop.f32.mrf.mxu0
        %v1021 = vadd.f32 %v972, %v1020
        %1022 = vmatmul.bf16.gmra.mxu0 %v482
        %v1023 = vpop.f32.mrf.mxu0
        %v1024 = vadd.f32 %v975, %v1023
        %v1025 = vpop.f32.mrf.mxu0
        %v1026 = vadd.f32 %v977, %v1025
        %1027 = vmatmul.bf16.gmra.mxu0 %v486
        %v1028 = vpop.f32.mrf.mxu0
        %v1029 = vadd.f32 %v980, %v1028
        %v1030 = vpop.f32.mrf.mxu0
        %v1031 = vadd.f32 %v982, %v1030
        %1032 = vmatmul.bf16.gmra.mxu0 %v490
        %v1033 = vpop.f32.mrf.mxu0
        %v1034 = vadd.f32 %v985, %v1033
        %v1035 = vpop.f32.mrf.mxu0
        %v1036 = vadd.f32 %v987, %v1035
        %1037 = vmatmul.bf16.gmra.mxu0 %v494
        %v1038 = vpop.f32.mrf.mxu0
        %v1039 = vadd.f32 %v990, %v1038
        %v1040 = vpop.f32.mrf.mxu0
        %v1041 = vadd.f32 %v992, %v1040
        %1042 = vdwg.mxu0
        %1043 = vmatpush.bf16.msra.mxu0 %v734
        %1044 = vmatpush.bf16.msra.mxu0 %v732
        %1045 = vmatpush.bf16.msra.mxu0 %v730
        %1046 = vmatpush.bf16.msra.mxu0 %v728
        %1047 = vmatpush.bf16.msra.mxu0 %v726
        %1048 = vmatpush.bf16.msra.mxu0 %v724
        %1049 = vmatpush.bf16.msra.mxu0 %v722
        %1050 = vmatpush.bf16.msra.mxu0 %v720
        %1051 = vmatmul.bf16.gmra.mxu0 %v463
        %v1052 = vpop.f32.mrf.mxu0
        %v1053 = vadd.f32 %v364, %v1052
        %v1054 = vpop.f32.mrf.mxu0
        %v1055 = vadd.f32 %v364, %v1054
        %1056 = vmatmul.bf16.gmra.mxu0 %v467
        %v1057 = vpop.f32.mrf.mxu0
        %v1058 = vadd.f32 %v364, %v1057
        %v1059 = vpop.f32.mrf.mxu0
        %v1060 = vadd.f32 %v364, %v1059
        %1061 = vmatmul.bf16.gmra.mxu0 %v471
        %v1062 = vpop.f32.mrf.mxu0
        %v1063 = vadd.f32 %v364, %v1062
        %v1064 = vpop.f32.mrf.mxu0
        %v1065 = vadd.f32 %v364, %v1064
        %1066 = vmatmul.bf16.gmra.mxu0 %v475
        %v1067 = vpop.f32.mrf.mxu0
        %v1068 = vadd.f32 %v364, %v1067
        %v1069 = vpop.f32.mrf.mxu0
        %v1070 = vadd.f32 %v364, %v1069
        %1071 = vmatmul.bf16.gmra.mxu0 %v479
        %v1072 = vpop.f32.mrf.mxu0
        %v1073 = vadd.f32 %v364, %v1072
        %v1074 = vpop.f32.mrf.mxu0
        %v1075 = vadd.f32 %v364, %v1074
        %1076 = vmatmul.bf16.gmra.mxu0 %v483
        %v1077 = vpop.f32.mrf.mxu0
        %v1078 = vadd.f32 %v364, %v1077
        %v1079 = vpop.f32.mrf.mxu0
        %v1080 = vadd.f32 %v364, %v1079
        %1081 = vmatmul.bf16.gmra.mxu0 %v487
        %v1082 = vpop.f32.mrf.mxu0
        %v1083 = vadd.f32 %v364, %v1082
        %v1084 = vpop.f32.mrf.mxu0
        %v1085 = vadd.f32 %v364, %v1084
        %1086 = vmatmul.bf16.gmra.mxu0 %v491
        %v1087 = vpop.f32.mrf.mxu0
        %v1088 = vadd.f32 %v364, %v1087
        %v1089 = vpop.f32.mrf.mxu0
        %v1090 = vadd.f32 %v364, %v1089
        %1091 = vdwg.mxu0
        %1092 = vmatpush.bf16.msra.mxu0 %v750
        %1093 = vmatpush.bf16.msra.mxu0 %v748
        %1094 = vmatpush.bf16.msra.mxu0 %v746
        %1095 = vmatpush.bf16.msra.mxu0 %v744
        %1096 = vmatpush.bf16.msra.mxu0 %v742
        %1097 = vmatpush.bf16.msra.mxu0 %v740
        %1098 = vmatpush.bf16.msra.mxu0 %v738
        %1099 = vmatpush.bf16.msra.mxu0 %v736
        %1100 = vmatmul.bf16.gmra.mxu0 %v464
        %v1101 = vpop.f32.mrf.mxu0
        %v1102 = vadd.f32 %v1053, %v1101
        %v1103 = vpop.f32.mrf.mxu0
        %v1104 = vadd.f32 %v1055, %v1103
        %1105 = vmatmul.bf16.gmra.mxu0 %v468
        %v1106 = vpop.f32.mrf.mxu0
        %v1107 = vadd.f32 %v1058, %v1106
        %v1108 = vpop.f32.mrf.mxu0
        %v1109 = vadd.f32 %v1060, %v1108
        %1110 = vmatmul.bf16.gmra.mxu0 %v472
        %v1111 = vpop.f32.mrf.mxu0
        %v1112 = vadd.f32 %v1063, %v1111
        %v1113 = vpop.f32.mrf.mxu0
        %v1114 = vadd.f32 %v1065, %v1113
        %1115 = vmatmul.bf16.gmra.mxu0 %v476
        %v1116 = vpop.f32.mrf.mxu0
        %v1117 = vadd.f32 %v1068, %v1116
        %v1118 = vpop.f32.mrf.mxu0
        %v1119 = vadd.f32 %v1070, %v1118
        %1120 = vmatmul.bf16.gmra.mxu0 %v480
        %v1121 = vpop.f32.mrf.mxu0
        %v1122 = vadd.f32 %v1073, %v1121
        %v1123 = vpop.f32.mrf.mxu0
        %v1124 = vadd.f32 %v1075, %v1123
        %1125 = vmatmul.bf16.gmra.mxu0 %v484
        %v1126 = vpop.f32.mrf.mxu0
        %v1127 = vadd.f32 %v1078, %v1126
        %v1128 = vpop.f32.mrf.mxu0
        %v1129 = vadd.f32 %v1080, %v1128
        %1130 = vmatmul.bf16.gmra.mxu0 %v488
        %v1131 = vpop.f32.mrf.mxu0
        %v1132 = vadd.f32 %v1083, %v1131
        %v1133 = vpop.f32.mrf.mxu0
        %v1134 = vadd.f32 %v1085, %v1133
        %1135 = vmatmul.bf16.gmra.mxu0 %v492
        %v1136 = vpop.f32.mrf.mxu0
        %v1137 = vadd.f32 %v1088, %v1136
        %v1138 = vpop.f32.mrf.mxu0
        %v1139 = vadd.f32 %v1090, %v1138
        %1140 = vdwg.mxu0
        %1141 = vmatpush.bf16.msra.mxu0 %v766
        %1142 = vmatpush.bf16.msra.mxu0 %v764
        %1143 = vmatpush.bf16.msra.mxu0 %v762
        %1144 = vmatpush.bf16.msra.mxu0 %v760
        %1145 = vmatpush.bf16.msra.mxu0 %v758
        %1146 = vmatpush.bf16.msra.mxu0 %v756
        %1147 = vmatpush.bf16.msra.mxu0 %v754
        %1148 = vmatpush.bf16.msra.mxu0 %v752
        %1149 = vmatmul.bf16.gmra.mxu0 %v465
        %v1150 = vpop.f32.mrf.mxu0
        %v1151 = vadd.f32 %v1102, %v1150
        %v1152 = vpop.f32.mrf.mxu0
        %v1153 = vadd.f32 %v1104, %v1152
        %1154 = vmatmul.bf16.gmra.mxu0 %v469
        %v1155 = vpop.f32.mrf.mxu0
        %v1156 = vadd.f32 %v1107, %v1155
        %v1157 = vpop.f32.mrf.mxu0
        %v1158 = vadd.f32 %v1109, %v1157
        %1159 = vmatmul.bf16.gmra.mxu0 %v473
        %v1160 = vpop.f32.mrf.mxu0
        %v1161 = vadd.f32 %v1112, %v1160
        %v1162 = vpop.f32.mrf.mxu0
        %v1163 = vadd.f32 %v1114, %v1162
        %1164 = vmatmul.bf16.gmra.mxu0 %v477
        %v1165 = vpop.f32.mrf.mxu0
        %v1166 = vadd.f32 %v1117, %v1165
        %v1167 = vpop.f32.mrf.mxu0
        %v1168 = vadd.f32 %v1119, %v1167
        %1169 = vmatmul.bf16.gmra.mxu0 %v481
        %v1170 = vpop.f32.mrf.mxu0
        %v1171 = vadd.f32 %v1122, %v1170
        %v1172 = vpop.f32.mrf.mxu0
        %v1173 = vadd.f32 %v1124, %v1172
        %1174 = vmatmul.bf16.gmra.mxu0 %v485
        %v1175 = vpop.f32.mrf.mxu0
        %v1176 = vadd.f32 %v1127, %v1175
        %v1177 = vpop.f32.mrf.mxu0
        %v1178 = vadd.f32 %v1129, %v1177
        %1179 = vmatmul.bf16.gmra.mxu0 %v489
        %v1180 = vpop.f32.mrf.mxu0
        %v1181 = vadd.f32 %v1132, %v1180
        %v1182 = vpop.f32.mrf.mxu0
        %v1183 = vadd.f32 %v1134, %v1182
        %1184 = vmatmul.bf16.gmra.mxu0 %v493
        %v1185 = vpop.f32.mrf.mxu0
        %v1186 = vadd.f32 %v1137, %v1185
        %v1187 = vpop.f32.mrf.mxu0
        %v1188 = vadd.f32 %v1139, %v1187
        %1189 = vdwg.mxu0
        %1190 = vmatpush.bf16.msra.mxu0 %v782
        %1191 = vmatpush.bf16.msra.mxu0 %v780
        %1192 = vmatpush.bf16.msra.mxu0 %v778
        %1193 = vmatpush.bf16.msra.mxu0 %v776
        %1194 = vmatpush.bf16.msra.mxu0 %v774
        %1195 = vmatpush.bf16.msra.mxu0 %v772
        %1196 = vmatpush.bf16.msra.mxu0 %v770
        %1197 = vmatpush.bf16.msra.mxu0 %v768
        %1198 = vmatmul.bf16.gmra.mxu0 %v466
        %v1199 = vpop.f32.mrf.mxu0
        %v1200 = vadd.f32 %v1151, %v1199
        %v1201 = vpop.f32.mrf.mxu0
        %v1202 = vadd.f32 %v1153, %v1201
        %1203 = vmatmul.bf16.gmra.mxu0 %v470
        %v1204 = vpop.f32.mrf.mxu0
        %v1205 = vadd.f32 %v1156, %v1204
        %v1206 = vpop.f32.mrf.mxu0
        %v1207 = vadd.f32 %v1158, %v1206
        %1208 = vmatmul.bf16.gmra.mxu0 %v474
        %v1209 = vpop.f32.mrf.mxu0
        %v1210 = vadd.f32 %v1161, %v1209
        %v1211 = vpop.f32.mrf.mxu0
        %v1212 = vadd.f32 %v1163, %v1211
        %1213 = vmatmul.bf16.gmra.mxu0 %v478
        %v1214 = vpop.f32.mrf.mxu0
        %v1215 = vadd.f32 %v1166, %v1214
        %v1216 = vpop.f32.mrf.mxu0
        %v1217 = vadd.f32 %v1168, %v1216
        %1218 = vmatmul.bf16.gmra.mxu0 %v482
        %v1219 = vpop.f32.mrf.mxu0
        %v1220 = vadd.f32 %v1171, %v1219
        %v1221 = vpop.f32.mrf.mxu0
        %v1222 = vadd.f32 %v1173, %v1221
        %1223 = vmatmul.bf16.gmra.mxu0 %v486
        %v1224 = vpop.f32.mrf.mxu0
        %v1225 = vadd.f32 %v1176, %v1224
        %v1226 = vpop.f32.mrf.mxu0
        %v1227 = vadd.f32 %v1178, %v1226
        %1228 = vmatmul.bf16.gmra.mxu0 %v490
        %v1229 = vpop.f32.mrf.mxu0
        %v1230 = vadd.f32 %v1181, %v1229
        %v1231 = vpop.f32.mrf.mxu0
        %v1232 = vadd.f32 %v1183, %v1231
        %1233 = vmatmul.bf16.gmra.mxu0 %v494
        %v1234 = vpop.f32.mrf.mxu0
        %v1235 = vadd.f32 %v1186, %v1234
        %v1236 = vpop.f32.mrf.mxu0
        %v1237 = vadd.f32 %v1188, %v1236
        %1238 = vdwg.mxu0
        %v1239 = vmax.f32 %v1004, 0.0
        %v1240 = vmax.f32 %v1200, 0.0
        %v1241 = vmax.f32 %v1006, 0.0
        %v1242 = vmax.f32 %v1202, 0.0
        %v1243 = vmax.f32 %v1009, 0.0
        %v1244 = vmax.f32 %v1205, 0.0
        %v1245 = vmax.f32 %v1011, 0.0
        %v1246 = vmax.f32 %v1207, 0.0
        %v1247 = vmax.f32 %v1014, 0.0
        %v1248 = vmax.f32 %v1210, 0.0
        %v1249 = vmax.f32 %v1016, 0.0
        %v1250 = vmax.f32 %v1212, 0.0
        %v1251 = vmax.f32 %v1019, 0.0
        %v1252 = vmax.f32 %v1215, 0.0
        %v1253 = vmax.f32 %v1021, 0.0
        %v1254 = vmax.f32 %v1217, 0.0
        %v1255 = vmax.f32 %v1024, 0.0
        %v1256 = vmax.f32 %v1220, 0.0
        %v1257 = vmax.f32 %v1026, 0.0
        %v1258 = vmax.f32 %v1222, 0.0
        %v1259 = vmax.f32 %v1029, 0.0
        %v1260 = vmax.f32 %v1225, 0.0
        %v1261 = vmax.f32 %v1031, 0.0
        %v1262 = vmax.f32 %v1227, 0.0
        %v1263 = vmax.f32 %v1034, 0.0
        %v1264 = vmax.f32 %v1230, 0.0
        %v1265 = vmax.f32 %v1036, 0.0
        %v1266 = vmax.f32 %v1232, 0.0
        %v1267 = vmax.f32 %v1039, 0.0
        %v1268 = vmax.f32 %v1235, 0.0
        %v1269 = vmax.f32 %v1041, 0.0
        %v1270 = vmax.f32 %v1237, 0.0
        %v1271 = vld [vmem:[%s3] sm:$0x3]
        %v1272 = vld [vmem:[#allocation2] sm:$0x1]
        %1274 = vset.pattern.permute.xlu0 0
        %1275 = vperm.xlu0 %1274, %v1272
        %v1276 = vpop.permute.xlu0 %1275
        %v1278 = vperm.slane %v1276, 0
        %v1280 = vperm.slane %v1271, 0
        %v1281 = vperm.slane %v1271, 1
        %1284 = vmatpush.xpose.msra.mxu0 %v1269
        %1285 = vmatpush.xpose.msra.mxu0 %v1267
        %1286 = vmatpush.xpose.msra.mxu0 %v1265
        %1287 = vmatpush.xpose.msra.mxu0 %v1263
        %1288 = vmatpush.xpose.msra.mxu0 %v1261
        %1289 = vmatpush.xpose.msra.mxu0 %v1259
        %1290 = vmatpush.xpose.msra.mxu0 %v1257
        %1291 = vmatpush.xpose.msra.mxu0 %v1255
        %1292 = vmatpush.xpose.msra.mxu0 %v1253
        %1293 = vmatpush.xpose.msra.mxu0 %v1251
        %1294 = vmatpush.xpose.msra.mxu0 %v1249
        %1295 = vmatpush.xpose.msra.mxu0 %v1247
        %1296 = vmatpush.xpose.msra.mxu0 %v1245
        %1297 = vmatpush.xpose.msra.mxu0 %v1243
        %1298 = vmatpush.xpose.msra.mxu0 %v1241
        %1299 = vmatpush.xpose.msra.mxu0 %v1239
        %1300 = vmatmul.f32.gmra.mxu0 %v1280
        %v1301 = vpop.f32.mrf.mxu0
        %v1302 = vadd.f32 %v1278, %v1301
        %1303 = vdwg.mxu0
        %1304 = vmatpush.xpose.msra.mxu0 %v1270
        %1305 = vmatpush.xpose.msra.mxu0 %v1268
        %1306 = vmatpush.xpose.msra.mxu0 %v1266
        %1307 = vmatpush.xpose.msra.mxu0 %v1264
        %1308 = vmatpush.xpose.msra.mxu0 %v1262
        %1309 = vmatpush.xpose.msra.mxu0 %v1260
        %1310 = vmatpush.xpose.msra.mxu0 %v1258
        %1311 = vmatpush.xpose.msra.mxu0 %v1256
        %1312 = vmatpush.xpose.msra.mxu0 %v1254
        %1313 = vmatpush.xpose.msra.mxu0 %v1252
        %1314 = vmatpush.xpose.msra.mxu0 %v1250
        %1315 = vmatpush.xpose.msra.mxu0 %v1248
        %1316 = vmatpush.xpose.msra.mxu0 %v1246
        %1317 = vmatpush.xpose.msra.mxu0 %v1244
        %1318 = vmatpush.xpose.msra.mxu0 %v1242
        %1319 = vmatpush.xpose.msra.mxu0 %v1240
        %1320 = vmatmul.f32.gmra.mxu0 %v1281
        %v1321 = vpop.f32.mrf.mxu0
        %v1322 = vadd.f32 %v1302, %v1321
        %1323 = vdwg.mxu0
        %v1324 = vxor.u32 %v1322, 2147483648
        %v1325 = vmul.f32 %v1324, 1.442695
        %v1326 = vpow.pop %v1325
        %v1327 = vadd.f32 %v1326, 1.0
        %v1328 = vrcp.pop %v1327
        %v1329 = vmul.f32 %v1327, %v1328
        %v1330 = vsub.f32 1.0, %v1329
        %v1331 = vmul.f32 %v1328, %v1330
        %v1332 = vadd.f32 %v1328, %v1331
        %vm1333 = vweird.f32 %v1327
        %vm1334 = vweird.f32 %v1328
        %vm1335 = vmor %vm1333, %vm1334
        %v1336 = vsel %vm1335, %v1328, %v1332
        %v1337 = vand.u32 2147483647, %v1327
        %vm1338 = vcmp.eq.f32.partialorder %v1337, 8.507059e+37
        %v1339 = vand.u32 %v1327, 2147483648
        %v1340 = vor.u32 1.1754944e-38, %v1339
        %v1341 = vsel %vm1338, %v1340, %v1336
        %v1342 = vmul.f32 1.0, %v1341
        %v1343 = vmul.f32 %v1342, 0.8
        %v1344 = vadd.f32 %v1343, 0.7
        %1345 = vst [vmem:[%s263] sm:$0x1] %v1344
        %s1346 = sand.u32 %s143, 1
        %s1347 = scalar_lea.sflag [#allocation5], %s1346
        %s1348 = sand.u32 %s143, 1
        %s1349 = scalar_lea.vmem [#allocation8], %s1348
        // Predicated region
        $region49: #{tpu_custom_call.1} parent=39 // pred_check
          %p1350 = pneg %p153
        $region50: #{tpu_custom_call.1} parent=39 // pred_check_branch
          %1352 = sbr.rel (%p1350) target = $region52
        $region51: #{tpu_custom_call.1} parent=39 // pred_region
          %1354 = vsyncadd %s1347, 0
          %s1355 = scalar_lea.hbm %s5, %s25
          %s1357 = sshll.u32 %s1349, 4
          %s1358 = int_to_ptr.vmem [resolvable:$true] %s1357
          %s1359 = sshll.u32 %s1355, 4
          %s1360 = int_to_ptr.hbm [resolvable:$true] %s1359
          %1362 = dma.vmem_to_hbm [thread:$0]  %s1358, 16, %s1360, %s1347
        $region52: #{tpu_custom_call.1} parent=39 // pred_fallthru
          _
      $region40: #{tpu_custom_call.1} parent=5 // pred_fallthru
        _
      %p1363 = scmp.le.s32.totalorder 2, %s20
      // Predicated region
      $region53: #{tpu_custom_call.1} parent=5 // pred_check
        %p1364 = pneg %p1363
      $region54: #{tpu_custom_call.1} parent=5 // pred_check_branch
        %1366 = sbr.rel (%p1364) target = $region56
      $region55: #{tpu_custom_call.1} parent=5 // pred_region
        %s1367 = ssub.s32 %s20, 2
        // Predicated region
        $region57: #{tpu_custom_call.1} parent=55 // pred_check
          %p1368 = pneg %p159
        $region58: #{tpu_custom_call.1} parent=55 // pred_check_branch
          %1370 = sbr.rel (%p1368) target = $region60
        $region59: #{tpu_custom_call.1} parent=55 // pred_region
          %s1371 = sand.u32 %s144, 1
          %s1372 = scalar_lea.sflag [#allocation5], %s1371
          %s1373 = sand.u32 %s144, 1
          %s1374 = scalar_lea.vmem [#allocation8], %s1373
          %1376 = dma.done %s1372, 16
        $region60: #{tpu_custom_call.1} parent=55 // pred_fallthru
          _
      $region56: #{tpu_custom_call.1} parent=5 // pred_fallthru
        _
    $region6: #{tpu_custom_call.1} parent=1 // loop_footer
      %s24 = sadd.s32 1, %s20
    $region7: #{tpu_custom_call.1} parent=1 // loop_footer_branch
      %19 = sbr.rel target = $region3
    $region8: #{tpu_custom_call.1} parent=1 // loop_exit
      _
    %1377 = vsyncpa [#allocation4], 1
    %s1378 = scalar_lea.sflag [#allocation4], 1
    %1379 = vsyncpa %s1378, 1
    %1380 = vsyncpa [#allocation7], 1
    %1381 = vsyncpa [#allocation5], 1
    %s1382 = scalar_lea.sflag [#allocation5], 1
    %1383 = vsyncpa %s1382, 1

</llo_original>
